<compile_context>
chip_gen: v7x
topology: tpu7x:2x2x1
jax: 0.10.0
libtpu: 0.0.40
codegen_flags: <defaults>
</compile_context>

<pallas_src>
import jax
import jax.numpy as jnp
from jax.experimental import pallas as pl
from jax.experimental.pallas import tpu as pltpu


# ----------------------------------------------------------------------------
# Kernel
# ----------------------------------------------------------------------------
def _head_kernel(x_ref, w1_ref, s1_ref, w2_ref, s2_ref, w3_ref, b3_ref, o_ref):
    # fc1 (+ folded bn1) -> relu      (bf16 MXU operands, f32 accumulation)
    h = jnp.dot(x_ref[...], w1_ref[...], preferred_element_type=jnp.float32)
    h = jnp.maximum(h + s1_ref[...], 0.0)

    # dropout == identity in eval; fc2 (+ folded bn2) -> relu
    h = jnp.dot(h.astype(w2_ref.dtype), w2_ref[...],
                preferred_element_type=jnp.float32)
    h = jnp.maximum(h + s2_ref[...], 0.0)

    # fc3
    y = jnp.dot(h.astype(w3_ref.dtype), w3_ref[...],
                preferred_element_type=jnp.float32)
    o_ref[...] = (y + b3_ref[...]).astype(o_ref.dtype)


# ----------------------------------------------------------------------------
# Glue: fold BN(eval) + bias, pad feature dims to lane-dense multiples of 128
# ----------------------------------------------------------------------------
def _round_up(n, m):
    return (n + m - 1) // m * m


def _fold_and_pad(params, eps, mm_dtype):
    """Fold eval-mode BN + Linear bias into (W, shift) per layer, zero-pad the
    feature dims to multiples of 128 lanes, cast weights to mm_dtype."""
    def fold(w, b, gamma, beta, mean, var):
        scale = gamma / jnp.sqrt(var + eps)            # per output channel
        w_f = w * scale[None, :]                       # fold scale into columns
        shift = (b - mean) * scale + beta              # single per-channel shift
        return w_f, shift

    w1, s1 = fold(params["w1"], params["b1"], params["bn1_gamma"],
                  params["bn1_beta"], params["bn1_mean"], params["bn1_var"])
    w2, s2 = fold(params["w2"], params["b2"], params["bn2_gamma"],
                  params["bn2_beta"], params["bn2_mean"], params["bn2_var"])
    w3, b3 = params["w3"], params["b3"]

    in_dim, h1 = w1.shape
    h2 = w2.shape[1]
    out_dim = w3.shape[1]
    h1p, h2p, odp = (_round_up(d, 128) for d in (h1, h2, out_dim))

    def pad_mat(w, rows, cols):
        return jnp.pad(w, ((0, rows - w.shape[0]), (0, cols - w.shape[1])))

    def pad_vec(v, cols):
        # Zero padding is REQUIRED: pad channels must stay exactly 0 after
        # relu so the zero-padded weight rows of the next layer see zeros.
        return jnp.pad(v, (0, cols - v.shape[0]))[None, :]

    w1p = pad_mat(w1, in_dim, h1p).astype(mm_dtype)
    w2p = pad_mat(w2, h1p, h2p).astype(mm_dtype)
    w3p = pad_mat(w3, h2p, odp).astype(mm_dtype)
    s1p = pad_vec(s1, h1p).astype(jnp.float32)
    s2p = pad_vec(s2, h2p).astype(jnp.float32)
    b3p = pad_vec(b3, odp).astype(jnp.float32)
    return (w1p, s1p, w2p, s2p, w3p, b3p), out_dim


def _choose_batch_tile(B, batch_tile):
    """Batch tile: multiple of 256 (MXU-friendly on v6e/v7x), capped by the
    request, and sized so large batches get >= 2 grid steps (v7x megacore).
    Tiny batches just round to 8 sublanes (single tile)."""
    b8 = _round_up(B, 8)
    if b8 <= 512:
        return b8
    req = max(256, _round_up(batch_tile, 256))
    half = _round_up(pl.cdiv(b8, 2), 256)   # guarantees >= 2 grid steps
    return min(req, half)


def pointnet_cls_head(x, params, *, eps=1e-5, batch_tile=1024,
                      mm_dtype=jnp.bfloat16):
    """x: (B, in_dim) float32.  Returns (B, out_dim) float32."""
    B, in_dim = x.shape
    folded, out_dim = _fold_and_pad(params, eps, mm_dtype)
    w1p, s1p, w2p, s2p, w3p, b3p = folded
    h1p = w1p.shape[1]
    h2p = w2p.shape[1]
    odp = w3p.shape[1]

    # ---- batch tiling ------------------------------------------------------
    tb = _choose_batch_tile(B, batch_tile)
    bp = _round_up(B, tb)

    xq = x.astype(mm_dtype)                  # cast first (pad on bf16 is cheaper)
    if bp != B:
        xq = jnp.pad(xq, ((0, bp - B), (0, 0)))

    # ---- VMEM budget for the enlarged tile ---------------------------------
    weight_bytes = (in_dim * h1p + h1p * h2p + h2p * odp) * 2   # bf16, 1 buffer
    shift_bytes = (h1p + h2p + odp) * 4
    working_set = (
        2 * tb * in_dim * 2            # double-buffered x tile (bf16)
        + 2 * tb * odp * 4             # double-buffered out tile (f32)
        + weight_bytes + shift_bytes   # single-buffered resident operands
        + tb * (h1p + h2p) * 4         # f32 intermediates inside the body
    )
    vmem_limit = int(working_set * 1.5) + (8 << 20)
    vmem_limit = max(32 << 20, min(vmem_limit, 56 << 20))   # v7x: 64 MiB/TC cap

    # ---- cost hint for the XLA scheduler ------------------------------------
    cost = pl.CostEstimate(
        flops=2 * bp * (in_dim * h1p + h1p * h2p + h2p * odp),
        bytes_accessed=bp * in_dim * 2 + bp * odp * 4 + weight_bytes + shift_bytes,
        transcendentals=0,
    )

    row = lambda i: (i, 0)        # x / out: advance along batch
    resident = lambda i: (0, 0)   # weights / shifts: resident across grid

    def res_spec(shape):
        # Constant index_map -> never re-fetched; single buffer saves VMEM.
        return pl.BlockSpec(shape, resident, pipeline_mode=pl.Buffered(1))

    out = pl.pallas_call(
        _head_kernel,
        out_shape=jax.ShapeDtypeStruct((bp, odp), jnp.float32),
        grid=(bp // tb,),
        in_specs=[
            pl.BlockSpec((tb, in_dim), row),
            res_spec(w1p.shape),
            res_spec(s1p.shape),
            res_spec(w2p.shape),
            res_spec(s2p.shape),
            res_spec(w3p.shape),
            res_spec(b3p.shape),
        ],
        out_specs=pl.BlockSpec((tb, odp), row),
        compiler_params=pltpu.CompilerParams(
            dimension_semantics=("parallel",),
            vmem_limit_bytes=vmem_limit),
        cost_estimate=cost,
    )(xq, w1p, s1p, w2p, s2p, w3p, b3p)

    return out[:B, :out_dim]


# ----------------------------------------------------------------------------
# Parameters / references
# ----------------------------------------------------------------------------
def init_params(key, in_dim, hidden_dims, out_dim):
    """Deterministic synthetic parameters (PyTorch-equivalent shapes)."""
    ks = jax.random.split(key, 8)
    h1, h2 = hidden_dims
    return {
        # nn.Linear weights stored transposed: (in, out)
        "w1": jax.random.normal(ks[0], (in_dim, h1), jnp.float32) * 0.05,
        "b1": jax.random.normal(ks[1], (h1,), jnp.float32) * 0.05,
        "w2": jax.random.normal(ks[2], (h1, h2), jnp.float32) * 0.05,
        "b2": jax.random.normal(ks[3], (h2,), jnp.float32) * 0.05,
        "w3": jax.random.normal(ks[4], (h2, out_dim), jnp.float32) * 0.05,
        "b3": jax.random.normal(ks[5], (out_dim,), jnp.float32) * 0.05,
        # BatchNorm1d params + running stats (eval mode)
        "bn1_gamma": jnp.ones((h1,), jnp.float32) * 1.1,
        "bn1_beta": jnp.full((h1,), 0.05, jnp.float32),
        "bn1_mean": jax.random.normal(ks[6], (h1,), jnp.float32) * 0.1,
        "bn1_var": jnp.ones((h1,), jnp.float32) * 0.9,
        "bn2_gamma": jnp.ones((h2,), jnp.float32) * 0.95,
        "bn2_beta": jnp.full((h2,), -0.02, jnp.float32),
        "bn2_mean": jax.random.normal(ks[7], (h2,), jnp.float32) * 0.1,
        "bn2_var": jnp.ones((h2,), jnp.float32) * 1.1,
    }


def reference_forward(x, params, eps=1e-5):
    """Pure-JAX f32 reference matching PyTorch eval-mode forward."""
    def bn(v, g, b, m, var):
        return (v - m) / jnp.sqrt(var + eps) * g + b

    h = x @ params["w1"] + params["b1"]
    h = jax.nn.relu(bn(h, params["bn1_gamma"], params["bn1_beta"],
                       params["bn1_mean"], params["bn1_var"]))
    h = h @ params["w2"] + params["b2"]          # dropout identity (eval)
    h = jax.nn.relu(bn(h, params["bn2_gamma"], params["bn2_beta"],
                       params["bn2_mean"], params["bn2_var"]))
    return h @ params["w3"] + params["b3"]


def emulated_forward(x, params, eps=1e-5, mm_dtype=jnp.bfloat16):
    """Pure-JAX emulation of the exact kernel arithmetic (bf16 operands,
    f32 accumulation) — used for a tight numerical check."""
    (w1p, s1p, w2p, s2p, w3p, b3p), out_dim = _fold_and_pad(params, eps, mm_dtype)
    h = jnp.dot(x.astype(mm_dtype), w1p, preferred_element_type=jnp.float32)
    h = jnp.maximum(h + s1p, 0.0)
    h = jnp.dot(h.astype(mm_dtype), w2p, preferred_element_type=jnp.float32)
    h = jnp.maximum(h + s2p, 0.0)
    y = jnp.dot(h.astype(mm_dtype), w3p, preferred_element_type=jnp.float32)
    return (y + b3p)[:, :out_dim]


if __name__ == "__main__":
    # Small shapes consistent with the module (Linear head on (B, in_dim)).
    B, in_dim, hidden_dims, out_dim = 4, 64, [32, 32], 16

    key = jax.random.PRNGKey(0)
    kx, kp = jax.random.split(key)
    x = jax.random.normal(kx, (B, in_dim), jnp.float32)
    params = init_params(kp, in_dim, hidden_dims, out_dim)

    out = jax.block_until_ready(pointnet_cls_head(x, params))
    assert out.shape == (B, out_dim)

    # Tight check vs a pure-JAX emulation of the exact kernel arithmetic.
    emu = emulated_forward(x, params)
    assert jnp.allclose(out, emu, atol=2e-3, rtol=2e-3), "mismatch vs bf16 emulation"

    # Semantic check vs the full-f32 PyTorch-equivalent forward (bf16 noise only).
    ref = reference_forward(x, params)
    assert jnp.allclose(out, ref, atol=1e-1, rtol=1e-1), "mismatch vs f32 reference"

    print("KERNEL_OK")
</pallas_src>

<mosaic_0001>
module attributes {stable_mosaic.version = 11 : i64} {
  func.func @_head_kernel(%arg0: i32, %arg1: memref<8x64xbf16, #tpu.memory_space<vmem>>, %arg2: memref<64x128xbf16, #tpu.memory_space<vmem>>, %arg3: memref<1x128xf32, #tpu.memory_space<vmem>>, %arg4: memref<128x128xbf16, #tpu.memory_space<vmem>>, %arg5: memref<1x128xf32, #tpu.memory_space<vmem>>, %arg6: memref<128x128xbf16, #tpu.memory_space<vmem>>, %arg7: memref<1x128xf32, #tpu.memory_space<vmem>>, %arg8: memref<8x128xf32, #tpu.memory_space<vmem>>) attributes {dimension_semantics = [#tpu.dimension_semantics<parallel>], iteration_bounds = array<i64: 1>, scalar_prefetch = 0 : i64, scratch_operands = 0 : i64, tpu.core_type = #tpu.core_type<tc>, window_params = [{transform_indices = @transform_0, window_bounds = array<i64: 8, 64>}, {pipeline_mode = #tpu.pipeline_mode<synchronous>, transform_indices = @transform_1, window_bounds = array<i64: 64, 128>}, {pipeline_mode = #tpu.pipeline_mode<synchronous>, transform_indices = @transform_2, window_bounds = array<i64: 1, 128>}, {pipeline_mode = #tpu.pipeline_mode<synchronous>, transform_indices = @transform_3, window_bounds = array<i64: 128, 128>}, {pipeline_mode = #tpu.pipeline_mode<synchronous>, transform_indices = @transform_4, window_bounds = array<i64: 1, 128>}, {pipeline_mode = #tpu.pipeline_mode<synchronous>, transform_indices = @transform_5, window_bounds = array<i64: 128, 128>}, {pipeline_mode = #tpu.pipeline_mode<synchronous>, transform_indices = @transform_6, window_bounds = array<i64: 1, 128>}, {transform_indices = @transform_7, window_bounds = array<i64: 8, 128>}]} {
    %c0 = arith.constant 0 : index
    %c0_0 = arith.constant 0 : index
    %0 = vector.load %arg1[%c0, %c0_0] : memref<8x64xbf16, #tpu.memory_space<vmem>>, vector<8x64xbf16>
    %c0_1 = arith.constant 0 : index
    %c0_2 = arith.constant 0 : index
    %1 = vector.load %arg2[%c0_1, %c0_2] : memref<64x128xbf16, #tpu.memory_space<vmem>>, vector<64x128xbf16>
    %cst = arith.constant dense<0.000000e+00> : vector<8x128xf32>
    %2 = tpu.matmul %0, %1, %cst {dimension_numbers = #tpu.dot_dimension_numbers<[1], [0], [0], [1], [0, 0, 1, 1], [], []>} : vector<8x64xbf16>, vector<64x128xbf16>, vector<8x128xf32> -> vector<8x128xf32>
    %c0_3 = arith.constant 0 : index
    %c0_4 = arith.constant 0 : index
    %3 = vector.load %arg3[%c0_3, %c0_4] : memref<1x128xf32, #tpu.memory_space<vmem>>, vector<1x128xf32>
    %4 = vector.broadcast %3 : vector<1x128xf32> to vector<8x128xf32>
    %5 = arith.addf %2, %4 : vector<8x128xf32>
    %cst_5 = arith.constant 0.000000e+00 : f32
    %6 = vector.broadcast %cst_5 : f32 to vector<8x128xf32>
    %7 = arith.maximumf %5, %6 : vector<8x128xf32>
    %8 = arith.truncf %7 : vector<8x128xf32> to vector<8x128xbf16>
    %c0_6 = arith.constant 0 : index
    %c0_7 = arith.constant 0 : index
    %9 = vector.load %arg4[%c0_6, %c0_7] : memref<128x128xbf16, #tpu.memory_space<vmem>>, vector<128x128xbf16>
    %cst_8 = arith.constant dense<0.000000e+00> : vector<8x128xf32>
    %10 = tpu.matmul %8, %9, %cst_8 {dimension_numbers = #tpu.dot_dimension_numbers<[1], [0], [0], [1], [0, 0, 1, 1], [], []>} : vector<8x128xbf16>, vector<128x128xbf16>, vector<8x128xf32> -> vector<8x128xf32>
    %c0_9 = arith.constant 0 : index
    %c0_10 = arith.constant 0 : index
    %11 = vector.load %arg5[%c0_9, %c0_10] : memref<1x128xf32, #tpu.memory_space<vmem>>, vector<1x128xf32>
    %12 = vector.broadcast %11 : vector<1x128xf32> to vector<8x128xf32>
    %13 = arith.addf %10, %12 : vector<8x128xf32>
    %cst_11 = arith.constant 0.000000e+00 : f32
    %14 = vector.broadcast %cst_11 : f32 to vector<8x128xf32>
    %15 = arith.maximumf %13, %14 : vector<8x128xf32>
    %16 = arith.truncf %15 : vector<8x128xf32> to vector<8x128xbf16>
    %c0_12 = arith.constant 0 : index
    %c0_13 = arith.constant 0 : index
    %17 = vector.load %arg6[%c0_12, %c0_13] : memref<128x128xbf16, #tpu.memory_space<vmem>>, vector<128x128xbf16>
    %cst_14 = arith.constant dense<0.000000e+00> : vector<8x128xf32>
    %18 = tpu.matmul %16, %17, %cst_14 {dimension_numbers = #tpu.dot_dimension_numbers<[1], [0], [0], [1], [0, 0, 1, 1], [], []>} : vector<8x128xbf16>, vector<128x128xbf16>, vector<8x128xf32> -> vector<8x128xf32>
    %c0_15 = arith.constant 0 : index
    %c0_16 = arith.constant 0 : index
    %19 = vector.load %arg7[%c0_15, %c0_16] : memref<1x128xf32, #tpu.memory_space<vmem>>, vector<1x128xf32>
    %20 = vector.broadcast %19 : vector<1x128xf32> to vector<8x128xf32>
    %21 = arith.addf %18, %20 : vector<8x128xf32>
    %c0_17 = arith.constant 0 : index
    %c0_18 = arith.constant 0 : index
    %22 = vector.load %arg8[%c0_17, %c0_18] : memref<8x128xf32, #tpu.memory_space<vmem>>, vector<8x128xf32>
    tpu.vector_store %arg8[%c0_17, %c0_18], %21 {strides = array<i32>} : memref<8x128xf32, #tpu.memory_space<vmem>>, vector<8x128xf32>,
    return
  }
  func.func @transform_0(%arg0: i32) -> (i32, i32) {
    %c0_i32 = arith.constant 0 : i32
    %c0_i32_0 = arith.constant 0 : i32
    return %arg0, %c0_i32 : i32, i32
  }
  func.func @transform_1(%arg0: i32) -> (i32, i32) {
    %c0_i32 = arith.constant 0 : i32
    %c0_i32_0 = arith.constant 0 : i32
    %c0_i32_1 = arith.constant 0 : i32
    return %c0_i32, %c0_i32_0 : i32, i32
  }
  func.func @transform_2(%arg0: i32) -> (i32, i32) {
    %c0_i32 = arith.constant 0 : i32
    %c0_i32_0 = arith.constant 0 : i32
    %c0_i32_1 = arith.constant 0 : i32
    return %c0_i32, %c0_i32_0 : i32, i32
  }
  func.func @transform_3(%arg0: i32) -> (i32, i32) {
    %c0_i32 = arith.constant 0 : i32
    %c0_i32_0 = arith.constant 0 : i32
    %c0_i32_1 = arith.constant 0 : i32
    return %c0_i32, %c0_i32_0 : i32, i32
  }
  func.func @transform_4(%arg0: i32) -> (i32, i32) {
    %c0_i32 = arith.constant 0 : i32
    %c0_i32_0 = arith.constant 0 : i32
    %c0_i32_1 = arith.constant 0 : i32
    return %c0_i32, %c0_i32_0 : i32, i32
  }
  func.func @transform_5(%arg0: i32) -> (i32, i32) {
    %c0_i32 = arith.constant 0 : i32
    %c0_i32_0 = arith.constant 0 : i32
    %c0_i32_1 = arith.constant 0 : i32
    return %c0_i32, %c0_i32_0 : i32, i32
  }
  func.func @transform_6(%arg0: i32) -> (i32, i32) {
    %c0_i32 = arith.constant 0 : i32
    %c0_i32_0 = arith.constant 0 : i32
    %c0_i32_1 = arith.constant 0 : i32
    return %c0_i32, %c0_i32_0 : i32, i32
  }
  func.func @transform_7(%arg0: i32) -> (i32, i32) {
    %c0_i32 = arith.constant 0 : i32
    %c0_i32_0 = arith.constant 0 : i32
    return %arg0, %c0_i32 : i32, i32
  }
}

</mosaic_0001>

<llo_original>
// kernel: tpu_custom_call.1
$region0: #{tpu_custom_call.1}
  #allocation0 [shape = 'u32[]', space=smem, size = 0x4, offset = 0x4, fixed_abs, tag = 'smem constant byte address 0x4 - core index']
  #allocation1 [shape = 'u32[144,128]{1,0:T(1,128)}', space=vmem, size = 0x12000, scoped, tag = 'internal scratch']
  %s0 = inlined_call_operand.hbm [shape: bf16[8,64], index: 0, kind: input, shape index: {}]
  %s1 = inlined_call_operand.hbm [shape: bf16[64,128], index: 1, kind: input, shape index: {}]
  %s2 = inlined_call_operand.vmem [shape: f32[1,128], index: 2, kind: input, shape index: {}]
  %s3 = inlined_call_operand.hbm [shape: bf16[128,128], index: 3, kind: input, shape index: {}]
  %s4 = inlined_call_operand.vmem [shape: f32[1,128], index: 4, kind: input, shape index: {}]
  %s5 = inlined_call_operand.hbm [shape: bf16[128,128], index: 5, kind: input, shape index: {}]
  %s6 = inlined_call_operand.vmem [shape: f32[1,128], index: 6, kind: input, shape index: {}]
  %s7 = inlined_call_operand.hbm [shape: f32[8,128], index: 7, kind: output, shape index: {}]
  %s8 = sld [smem:[#allocation0]]
  $region54: #{tpu_custom_call.1} parent=0
    _
  %s10 = ssub.s32 1, %s8
  %s11 = scalar_select 0, %s10, %s8
  $region1: #{tpu_custom_call.1} parent=0
    #allocation2 [shape = 'u8[2048]{0}', space=vmem, size = 0x800, scoped, tag = 'input window, operand 0, single buffered']
    #allocation3 [shape = 's32[1]{0}', space=sflag, size = 0x4, scoped, tag = 'scoped memory for tpu_custom_call.1']
    #allocation4 [shape = 's32[1]{0}', space=sflag, size = 0x4, scoped, tag = 'scoped memory for tpu_custom_call.1']
    #allocation5 [shape = 'u8[16384]{0}', space=vmem, size = 0x4000, scoped, tag = 'input window, operand 1, single buffered']
    #allocation6 [shape = 's32[1]{0}', space=sflag, size = 0x4, scoped, tag = 'scoped memory for tpu_custom_call.1']
    #allocation7 [shape = 'u8[32768]{0}', space=vmem, size = 0x8000, scoped, tag = 'input window, operand 3, single buffered']
    #allocation8 [shape = 'u8[32768]{0}', space=vmem, size = 0x8000, scoped, tag = 'input window, operand 5, single buffered']
    #allocation9 [shape = 's32[1]{0}', space=sflag, size = 0x4, scoped, tag = 'scoped memory for tpu_custom_call.1']
    #allocation10 [shape = 'u8[4096]{0}', space=vmem, size = 0x1000, scoped, tag = 'output window, operand 0, single buffered']
    %12 = vsyncpa [#allocation3], 0
    %13 = vsyncpa [#allocation6], 0
    %14 = vsyncpa [#allocation9], 0
    %15 = vsyncpa [#allocation4], 0
    // Predicated region
    $region2: #{tpu_custom_call.1} parent=1 // pred_check
      _
    $region3: #{tpu_custom_call.1} parent=1 // pred_check_branch
      %17 = sbr.rel (0) target = $region5
    $region4: #{tpu_custom_call.1} parent=1 // pred_region
      %s19 = ssub.s32 64, 64
      %20 = vsyncadd [#allocation3], %s19
      %s22 = sshll.u32 [#allocation2], 4
      %s23 = int_to_ptr.vmem [resolvable:$true] %s22
      %25 = dma.hbm_to_vmem [thread:$0]  %s0, 64, %s23, [#allocation3]
    $region5: #{tpu_custom_call.1} parent=1 // pred_fallthru
      _
    // Predicated region
    $region6: #{tpu_custom_call.1} parent=1 // pred_check
      _
    $region7: #{tpu_custom_call.1} parent=1 // pred_check_branch
      %27 = sbr.rel (0) target = $region9
    $region8: #{tpu_custom_call.1} parent=1 // pred_region
      %s29 = ssub.s32 512, 512
      %30 = vsyncadd [#allocation6], %s29
      %s31 = sshll.u32 [#allocation5], 4
      %s32 = int_to_ptr.vmem [resolvable:$true] %s31
      %37 = dma.hbm_to_vmem [thread:$0]  %s1, 512, %s32, [#allocation6], 64, 64, 4
    $region9: #{tpu_custom_call.1} parent=1 // pred_fallthru
      _
    // Predicated region
    $region10: #{tpu_custom_call.1} parent=1 // pred_check
      _
    $region11: #{tpu_custom_call.1} parent=1 // pred_check_branch
      %39 = sbr.rel (0) target = $region13
    $region12: #{tpu_custom_call.1} parent=1 // pred_region
      _
    $region13: #{tpu_custom_call.1} parent=1 // pred_fallthru
      _
    // Predicated region
    $region14: #{tpu_custom_call.1} parent=1 // pred_check
      _
    $region15: #{tpu_custom_call.1} parent=1 // pred_check_branch
      %41 = sbr.rel (0) target = $region17
    $region16: #{tpu_custom_call.1} parent=1 // pred_region
      %s43 = ssub.s32 1024, 1024
      %44 = vsyncadd [#allocation6], %s43
      %s45 = sshll.u32 [#allocation7], 4
      %s46 = int_to_ptr.vmem [resolvable:$true] %s45
      %51 = dma.hbm_to_vmem [thread:$0]  %s3, 1024, %s46, [#allocation6], 64, 64, 4
    $region17: #{tpu_custom_call.1} parent=1 // pred_fallthru
      _
    // Predicated region
    $region18: #{tpu_custom_call.1} parent=1 // pred_check
      _
    $region19: #{tpu_custom_call.1} parent=1 // pred_check_branch
      %53 = sbr.rel (0) target = $region21
    $region20: #{tpu_custom_call.1} parent=1 // pred_region
      _
    $region21: #{tpu_custom_call.1} parent=1 // pred_fallthru
      _
    // Predicated region
    $region22: #{tpu_custom_call.1} parent=1 // pred_check
      _
    $region23: #{tpu_custom_call.1} parent=1 // pred_check_branch
      %55 = sbr.rel (0) target = $region25
    $region24: #{tpu_custom_call.1} parent=1 // pred_region
      %s57 = ssub.s32 1024, 1024
      %58 = vsyncadd [#allocation9], %s57
      %s59 = sshll.u32 [#allocation8], 4
      %s60 = int_to_ptr.vmem [resolvable:$true] %s59
      %65 = dma.hbm_to_vmem [thread:$0]  %s5, 1024, %s60, [#allocation9], 64, 64, 4
    $region25: #{tpu_custom_call.1} parent=1 // pred_fallthru
      _
    // Predicated region
    $region26: #{tpu_custom_call.1} parent=1 // pred_check
      _
    $region27: #{tpu_custom_call.1} parent=1 // pred_check_branch
      %67 = sbr.rel (0) target = $region29
    $region28: #{tpu_custom_call.1} parent=1 // pred_region
      _
    $region29: #{tpu_custom_call.1} parent=1 // pred_fallthru
      _
    // Predicated region
    $region30: #{tpu_custom_call.1} parent=1 // pred_check
      _
    $region31: #{tpu_custom_call.1} parent=1 // pred_check_branch
      %69 = sbr.rel (0) target = $region33
    $region32: #{tpu_custom_call.1} parent=1 // pred_region
      %70 = dma.done [#allocation3], 64
    $region33: #{tpu_custom_call.1} parent=1 // pred_fallthru
      _
    // Predicated region
    $region34: #{tpu_custom_call.1} parent=1 // pred_check
      _
    $region35: #{tpu_custom_call.1} parent=1 // pred_check_branch
      %72 = sbr.rel (0) target = $region37
    $region36: #{tpu_custom_call.1} parent=1 // pred_region
      %73 = dma.done [#allocation6], 512
    $region37: #{tpu_custom_call.1} parent=1 // pred_fallthru
      _
    // Predicated region
    $region38: #{tpu_custom_call.1} parent=1 // pred_check
      _
    $region39: #{tpu_custom_call.1} parent=1 // pred_check_branch
      %75 = sbr.rel (0) target = $region41
    $region40: #{tpu_custom_call.1} parent=1 // pred_region
      %76 = dma.done [#allocation6], 1024
    $region41: #{tpu_custom_call.1} parent=1 // pred_fallthru
      _
    // Predicated region
    $region42: #{tpu_custom_call.1} parent=1 // pred_check
      _
    $region43: #{tpu_custom_call.1} parent=1 // pred_check_branch
      %78 = sbr.rel (0) target = $region45
    $region44: #{tpu_custom_call.1} parent=1 // pred_region
      %79 = dma.done [#allocation9], 1024
    $region45: #{tpu_custom_call.1} parent=1 // pred_fallthru
      _
    %v81 = vld [vmem:[#allocation2] sm:$0xf]
    %v82 = vld [vmem:[#allocation5] sm:$0xf]
    %v83 = vld [vmem:[#allocation5 + $0x4] sm:$0xf]
    %v84 = vld [vmem:[#allocation5 + $0x8] sm:$0xf]
    %v85 = vld [vmem:[#allocation5 + $0xc] sm:$0xf]
    %v86 = vld [vmem:[#allocation5 + $0x10] sm:$0xf]
    %v87 = vld [vmem:[#allocation5 + $0x14] sm:$0xf]
    %v88 = vld [vmem:[#allocation5 + $0x18] sm:$0xf]
    %v89 = vld [vmem:[#allocation5 + $0x1c] sm:$0xf]
    %v90 = vld [vmem:[%s2] sm:$0x1]
    %v92 = vlaneseq
    %v93 = vshrl.u32 %v92, 7
    %v94 = vsub.s32 0, %v93
    %v95 = vrot.slane %v90, %v94
    %v105 = vunpack.c.l.b16 %v82
    %v106 = vunpack.c.l.b16 %v83
    %v107 = vunpack.c.l.b16 %v84
    %v108 = vunpack.c.l.b16 %v85
    %v109 = vunpack.c.l.b16 %v86
    %v110 = vunpack.c.l.b16 %v87
    %v111 = vunpack.c.l.b16 %v88
    %v112 = vunpack.c.l.b16 %v89
    %v113 = vpack.c.b16 %v106, %v105
    %v114 = vpack.c.b16 %v108, %v107
    %v115 = vpack.c.b16 %v110, %v109
    %v116 = vpack.c.b16 %v112, %v111
    %vm121 = vcmask 523264
    %v123 = vsel %vm121, %v81, 0
    %125 = vmatprep.subr.bf16.mxu0 0
    %126 = vmatpush1.bf16.msra.mxu0 %v113
    %127 = vmatprep.subr.bf16.mxu0 0
    %128 = vmatpush1.bf16.msra.mxu0 %v114
    %129 = vmatprep.subr.bf16.mxu0 0
    %130 = vmatpush1.bf16.msra.mxu0 %v115
    %131 = vmatprep.subr.bf16.mxu0 0
    %132 = vmatpush1.bf16.msra.mxu0 %v116
    %133 = vmatprep.subr.bf16.mxu0 0
    %134 = vmatpush1.bf16.msra.mxu0 0
    %135 = vmatprep.subr.bf16.mxu0 0
    %136 = vmatpush1.bf16.msra.mxu0 0
    %137 = vmatprep.subr.bf16.mxu0 0
    %138 = vmatpush1.bf16.msra.mxu0 0
    %139 = vmatprep.subr.bf16.mxu0 0
    %140 = vmatpush1.bf16.msra.mxu0 0
    %141 = vmatprep.subr.bf16.mxu0 0
    %142 = vmatpush1.bf16.msra.mxu0 0
    %143 = vmatprep.subr.bf16.mxu0 0
    %144 = vmatpush1.bf16.msra.mxu0 0
    %145 = vmatprep.subr.bf16.mxu0 0
    %146 = vmatpush1.bf16.msra.mxu0 0
    %147 = vmatprep.subr.bf16.mxu0 0
    %148 = vmatpush1.bf16.msra.mxu0 0
    %149 = vmatprep.subr.bf16.mxu0 0
    %150 = vmatpush1.bf16.msra.mxu0 0
    %151 = vmatprep.subr.bf16.mxu0 0
    %152 = vmatpush1.bf16.msra.mxu0 0
    %153 = vmatprep.subr.bf16.mxu0 0
    %154 = vmatpush1.bf16.msra.mxu0 0
    %155 = vmatprep.subr.bf16.mxu0 0
    %156 = vmatpush1.bf16.msra.mxu0 0
    %157 = vmatprep.mubr.bf16.mxu0 0
    %158 = vmatmul.mubr.bf16.gmra.mrb[0].mxu0 %v123
    %v159 = vpop.f32.mrb[0].mxu0
    %v160 = vadd.f32 %v95, %v159
    %v161 = vpop.f32.mrb[0].mxu0
    %v162 = vpop.f32.mrb[0].mxu0
    %v163 = vpop.f32.mrb[0].mxu0
    %164 = vdwg.mxu0
    %v165 = vmax.f32 %v160, 0.0
    %v166 = vpack.c.bf16 %v165, %v165
    %v167 = vld [vmem:[#allocation7] sm:$0xf]
    %v168 = vld [vmem:[#allocation7 + $0x4] sm:$0xf]
    %v169 = vld [vmem:[#allocation7 + $0x8] sm:$0xf]
    %v170 = vld [vmem:[#allocation7 + $0xc] sm:$0xf]
    %v171 = vld [vmem:[#allocation7 + $0x10] sm:$0xf]
    %v172 = vld [vmem:[#allocation7 + $0x14] sm:$0xf]
    %v173 = vld [vmem:[#allocation7 + $0x18] sm:$0xf]
    %v174 = vld [vmem:[#allocation7 + $0x1c] sm:$0xf]
    %v175 = vld [vmem:[#allocation7 + $0x20] sm:$0xf]
    %v176 = vld [vmem:[#allocation7 + $0x24] sm:$0xf]
    %v177 = vld [vmem:[#allocation7 + $0x28] sm:$0xf]
    %v178 = vld [vmem:[#allocation7 + $0x2c] sm:$0xf]
    %v179 = vld [vmem:[#allocation7 + $0x30] sm:$0xf]
    %v180 = vld [vmem:[#allocation7 + $0x34] sm:$0xf]
    %v181 = vld [vmem:[#allocation7 + $0x38] sm:$0xf]
    %v182 = vld [vmem:[#allocation7 + $0x3c] sm:$0xf]
    %v183 = vld [vmem:[%s4] sm:$0x1]
    %v185 = vlaneseq
    %v186 = vshrl.u32 %v185, 7
    %v187 = vsub.s32 0, %v186
    %v188 = vrot.slane %v183, %v187
    %v206 = vunpack.c.l.b16 %v167
    %v207 = vunpack.c.l.b16 %v168
    %v208 = vunpack.c.l.b16 %v169
    %v209 = vunpack.c.l.b16 %v170
    %v210 = vunpack.c.l.b16 %v171
    %v211 = vunpack.c.l.b16 %v172
    %v212 = vunpack.c.l.b16 %v173
    %v213 = vunpack.c.l.b16 %v174
    %v214 = vunpack.c.l.b16 %v175
    %v215 = vunpack.c.l.b16 %v176
    %v216 = vunpack.c.l.b16 %v177
    %v217 = vunpack.c.l.b16 %v178
    %v218 = vunpack.c.l.b16 %v179
    %v219 = vunpack.c.l.b16 %v180
    %v220 = vunpack.c.l.b16 %v181
    %v221 = vunpack.c.l.b16 %v182
    %v222 = vpack.c.b16 %v207, %v206
    %v223 = vpack.c.b16 %v209, %v208
    %v224 = vpack.c.b16 %v211, %v210
    %v225 = vpack.c.b16 %v213, %v212
    %v226 = vpack.c.b16 %v215, %v214
    %v227 = vpack.c.b16 %v217, %v216
    %v228 = vpack.c.b16 %v219, %v218
    %v229 = vpack.c.b16 %v221, %v220
    %238 = vmatprep.subr.bf16.mxu0 0
    %239 = vmatpush1.bf16.msra.mxu0 %v222
    %240 = vmatprep.subr.bf16.mxu0 0
    %241 = vmatpush1.bf16.msra.mxu0 %v223
    %242 = vmatprep.subr.bf16.mxu0 0
    %243 = vmatpush1.bf16.msra.mxu0 %v224
    %244 = vmatprep.subr.bf16.mxu0 0
    %245 = vmatpush1.bf16.msra.mxu0 %v225
    %246 = vmatprep.subr.bf16.mxu0 0
    %247 = vmatpush1.bf16.msra.mxu0 %v226
    %248 = vmatprep.subr.bf16.mxu0 0
    %249 = vmatpush1.bf16.msra.mxu0 %v227
    %250 = vmatprep.subr.bf16.mxu0 0
    %251 = vmatpush1.bf16.msra.mxu0 %v228
    %252 = vmatprep.subr.bf16.mxu0 0
    %253 = vmatpush1.bf16.msra.mxu0 %v229
    %254 = vmatprep.subr.bf16.mxu0 0
    %255 = vmatpush1.bf16.msra.mxu0 0
    %256 = vmatprep.subr.bf16.mxu0 0
    %257 = vmatpush1.bf16.msra.mxu0 0
    %258 = vmatprep.subr.bf16.mxu0 0
    %259 = vmatpush1.bf16.msra.mxu0 0
    %260 = vmatprep.subr.bf16.mxu0 0
    %261 = vmatpush1.bf16.msra.mxu0 0
    %262 = vmatprep.subr.bf16.mxu0 0
    %263 = vmatpush1.bf16.msra.mxu0 0
    %264 = vmatprep.subr.bf16.mxu0 0
    %265 = vmatpush1.bf16.msra.mxu0 0
    %266 = vmatprep.subr.bf16.mxu0 0
    %267 = vmatpush1.bf16.msra.mxu0 0
    %268 = vmatprep.subr.bf16.mxu0 0
    %269 = vmatpush1.bf16.msra.mxu0 0
    %270 = vmatprep.mubr.bf16.mxu0 0
    %271 = vmatmul.mubr.bf16.gmra.mrb[0].mxu0 %v166
    %v272 = vpop.f32.mrb[0].mxu0
    %v273 = vadd.f32 %v188, %v272
    %v274 = vpop.f32.mrb[0].mxu0
    %v275 = vpop.f32.mrb[0].mxu0
    %v276 = vpop.f32.mrb[0].mxu0
    %277 = vdwg.mxu0
    %v278 = vmax.f32 %v273, 0.0
    %v279 = vpack.c.bf16 %v278, %v278
    %v280 = vld [vmem:[#allocation8] sm:$0xf]
    %v281 = vld [vmem:[#allocation8 + $0x4] sm:$0xf]
    %v282 = vld [vmem:[#allocation8 + $0x8] sm:$0xf]
    %v283 = vld [vmem:[#allocation8 + $0xc] sm:$0xf]
    %v284 = vld [vmem:[#allocation8 + $0x10] sm:$0xf]
    %v285 = vld [vmem:[#allocation8 + $0x14] sm:$0xf]
    %v286 = vld [vmem:[#allocation8 + $0x18] sm:$0xf]
    %v287 = vld [vmem:[#allocation8 + $0x1c] sm:$0xf]
    %v288 = vld [vmem:[#allocation8 + $0x20] sm:$0xf]
    %v289 = vld [vmem:[#allocation8 + $0x24] sm:$0xf]
    %v290 = vld [vmem:[#allocation8 + $0x28] sm:$0xf]
    %v291 = vld [vmem:[#allocation8 + $0x2c] sm:$0xf]
    %v292 = vld [vmem:[#allocation8 + $0x30] sm:$0xf]
    %v293 = vld [vmem:[#allocation8 + $0x34] sm:$0xf]
    %v294 = vld [vmem:[#allocation8 + $0x38] sm:$0xf]
    %v295 = vld [vmem:[#allocation8 + $0x3c] sm:$0xf]
    %v296 = vld [vmem:[%s6] sm:$0x1]
    %v298 = vlaneseq
    %v299 = vshrl.u32 %v298, 7
    %v300 = vsub.s32 0, %v299
    %v301 = vrot.slane %v296, %v300
    %v319 = vunpack.c.l.b16 %v280
    %v320 = vunpack.c.l.b16 %v281
    %v321 = vunpack.c.l.b16 %v282
    %v322 = vunpack.c.l.b16 %v283
    %v323 = vunpack.c.l.b16 %v284
    %v324 = vunpack.c.l.b16 %v285
    %v325 = vunpack.c.l.b16 %v286
    %v326 = vunpack.c.l.b16 %v287
    %v327 = vunpack.c.l.b16 %v288
    %v328 = vunpack.c.l.b16 %v289
    %v329 = vunpack.c.l.b16 %v290
    %v330 = vunpack.c.l.b16 %v291
    %v331 = vunpack.c.l.b16 %v292
    %v332 = vunpack.c.l.b16 %v293
    %v333 = vunpack.c.l.b16 %v294
    %v334 = vunpack.c.l.b16 %v295
    %v335 = vpack.c.b16 %v320, %v319
    %v336 = vpack.c.b16 %v322, %v321
    %v337 = vpack.c.b16 %v324, %v323
    %v338 = vpack.c.b16 %v326, %v325
    %v339 = vpack.c.b16 %v328, %v327
    %v340 = vpack.c.b16 %v330, %v329
    %v341 = vpack.c.b16 %v332, %v331
    %v342 = vpack.c.b16 %v334, %v333
    %351 = vmatprep.subr.bf16.mxu0 0
    %352 = vmatpush1.bf16.msra.mxu0 %v335
    %353 = vmatprep.subr.bf16.mxu0 0
    %354 = vmatpush1.bf16.msra.mxu0 %v336
    %355 = vmatprep.subr.bf16.mxu0 0
    %356 = vmatpush1.bf16.msra.mxu0 %v337
    %357 = vmatprep.subr.bf16.mxu0 0
    %358 = vmatpush1.bf16.msra.mxu0 %v338
    %359 = vmatprep.subr.bf16.mxu0 0
    %360 = vmatpush1.bf16.msra.mxu0 %v339
    %361 = vmatprep.subr.bf16.mxu0 0
    %362 = vmatpush1.bf16.msra.mxu0 %v340
    %363 = vmatprep.subr.bf16.mxu0 0
    %364 = vmatpush1.bf16.msra.mxu0 %v341
    %365 = vmatprep.subr.bf16.mxu0 0
    %366 = vmatpush1.bf16.msra.mxu0 %v342
    %367 = vmatprep.subr.bf16.mxu0 0
    %368 = vmatpush1.bf16.msra.mxu0 0
    %369 = vmatprep.subr.bf16.mxu0 0
    %370 = vmatpush1.bf16.msra.mxu0 0
    %371 = vmatprep.subr.bf16.mxu0 0
    %372 = vmatpush1.bf16.msra.mxu0 0
    %373 = vmatprep.subr.bf16.mxu0 0
    %374 = vmatpush1.bf16.msra.mxu0 0
    %375 = vmatprep.subr.bf16.mxu0 0
    %376 = vmatpush1.bf16.msra.mxu0 0
    %377 = vmatprep.subr.bf16.mxu0 0
    %378 = vmatpush1.bf16.msra.mxu0 0
    %379 = vmatprep.subr.bf16.mxu0 0
    %380 = vmatpush1.bf16.msra.mxu0 0
    %381 = vmatprep.subr.bf16.mxu0 0
    %382 = vmatpush1.bf16.msra.mxu0 0
    %383 = vmatprep.mubr.bf16.mxu0 0
    %384 = vmatmul.mubr.bf16.gmra.mrb[0].mxu0 %v279
    %v385 = vpop.f32.mrb[0].mxu0
    %v386 = vadd.f32 %v301, %v385
    %v387 = vpop.f32.mrb[0].mxu0
    %v388 = vpop.f32.mrb[0].mxu0
    %v389 = vpop.f32.mrb[0].mxu0
    %390 = vdwg.mxu0
    %391 = vst [vmem:[#allocation10] sm:$0xff] %v386
    // Predicated region
    $region46: #{tpu_custom_call.1} parent=1 // pred_check
      _
    $region47: #{tpu_custom_call.1} parent=1 // pred_check_branch
      %393 = sbr.rel (0) target = $region49
    $region48: #{tpu_custom_call.1} parent=1 // pred_region
      %s395 = ssub.s32 128, 128
      %396 = vsyncadd [#allocation4], %s395
      %s398 = sshll.u32 [#allocation10], 4
      %s399 = int_to_ptr.vmem [resolvable:$true] %s398
      %401 = dma.vmem_to_hbm [thread:$0]  %s399, 128, %s7, [#allocation4]
    $region49: #{tpu_custom_call.1} parent=1 // pred_fallthru
      _
    // Predicated region
    $region50: #{tpu_custom_call.1} parent=1 // pred_check
      _
    $region51: #{tpu_custom_call.1} parent=1 // pred_check_branch
      %403 = sbr.rel (0) target = $region53
    $region52: #{tpu_custom_call.1} parent=1 // pred_region
      %404 = dma.done [#allocation4], 128
    $region53: #{tpu_custom_call.1} parent=1 // pred_fallthru
      _
    %405 = vsyncpa [#allocation3], 1
    %406 = vsyncpa [#allocation6], 1
    %407 = vsyncpa [#allocation9], 1
    %408 = vsyncpa [#allocation4], 1

</llo_original>
